<compile_context>
chip_gen: v5e
topology: v5e:2x2
jax: 0.10.0
libtpu: 0.0.40
codegen_flags: <defaults>
</compile_context>

<pallas_src>
import jax
import jax.numpy as jnp
from jax.experimental import pallas as pl
from jax.experimental.pallas import tpu as pltpu

T, B = 8, 2          # sequence length, batch
CIN, COUT = 4, 8     # conv channels
H = W = 16           # spatial
KH = KW = 3          # conv kernel (padding=1, stride=1)
BN_EPS = 1e-5


def conv_bn_kernel(x_ref, w_ref, bias_ref, o_ref):
    """One block of SB flattened (t, b) samples per grid step.

    x_ref:    (SB, H+2, (W+2)*CIN)  zero-padded NHWC input, (w, cin) merged
    w_ref:    (KH*(W+2)*CIN, W*COUT) banded conv weights (BN scale folded in)
    bias_ref: (1, W*COUT)            folded BN/conv bias, tiled lane-dense
    o_ref:    (SB, H, W*COUT)        lane-dense output slab
    """
    sb = x_ref.shape[0]
    krow = x_ref.shape[2]            # (W+2)*CIN = 72

    x = x_ref[...]                   # load block once
    w = w_ref[...]                   # load weights once, slice statically

    def tap(ky):
        # rows for output row h are padded input rows h+ky; (SB, H) -> SB*H
        rows = x[:, ky:ky + H, :].reshape(sb * H, krow)      # (128, 72)
        wk = w[ky * krow:(ky + 1) * krow, :]                 # (72, 128)
        return jnp.dot(rows, wk, preferred_element_type=jnp.float32)

    # register accumulation of the KH=3 row-taps (no VMEM scratch)
    acc = tap(0)
    for ky in range(1, KH):
        acc = acc + tap(ky)                                  # (SB*H, W*COUT)

    y = acc + bias_ref[...]                                  # lane-dense epilogue
    o_ref[...] = y.reshape(sb, H, W * COUT).astype(o_ref.dtype)


def seq_to_ann_conv_bn(x_seq, weight, conv_bias, gamma, beta, run_mean,
                       run_var, eps=BN_EPS, num_blocks=2, matmul_dtype=None):
    """x_seq: [T, B, Cin, H, W] (NCHW per-step, PyTorch convention).

    Returns [T, B, Cout, H, W], matching
    SeqToANNContainer(Conv2d(Cin,Cout,3,padding=1), BatchNorm2d(Cout)).forward
    with BN in eval mode.

    num_blocks: grid steps (2 keeps both v7x TensorCores busy; 1 is fine on
    v5e/v6e).  matmul_dtype=jnp.bfloat16 is recommended on v6e/v7x (loosen
    the comparison tolerance accordingly).
    """
    t, b, c, h, w = x_seq.shape
    n = t * b
    assert (c, h, w) == (CIN, H, W), (c, h, w)
    assert n % num_blocks == 0, (n, num_blocks)
    sb = n // num_blocks

    # --- glue: flatten(0, 1), NCHW -> NHWC, zero pad spatial halo, merge (w,c)
    x = x_seq.reshape(n, c, h, w)
    x = jnp.transpose(x, (0, 2, 3, 1))
    x = jnp.pad(x, ((0, 0), (1, 1), (1, 1), (0, 0)))
    x = x.reshape(n, H + 2, (W + 2) * CIN)
    # TODO(synk): at realistic sizes the transpose/pad could be folded into the
    # kernel (halo built in VMEM) to avoid extra HBM round trips; noise here.

    # --- fold conv bias + eval-mode BN into weights / per-channel bias (f32) --
    inv_std = 1.0 / jnp.sqrt(run_var.astype(jnp.float32) + eps)
    scale = gamma.astype(jnp.float32) * inv_std                       # (COUT,)
    bias = beta.astype(jnp.float32) + (conv_bias.astype(jnp.float32)
                                       - run_mean.astype(jnp.float32)) * scale
    w_hwio = jnp.transpose(weight, (2, 3, 1, 0)).astype(jnp.float32)  # (KH,KW,CIN,COUT)
    w_hwio = w_hwio * scale[None, None, None, :]          # BN scale folded in

    # --- build banded (Toeplitz-over-W) weight: absorbs the kx taps ----------
    # m[ky, w', ci, w, c] = sum_kx [w' == w + kx] * w_hwio[ky, kx, ci, c]
    kxs = jnp.arange(KW)[:, None, None]                   # (KW, 1,   1)
    wp = jnp.arange(W + 2)[None, :, None]                 # (1,  W+2, 1)
    wo = jnp.arange(W)[None, None, :]                     # (1,  1,   W)
    shift = (wp == wo + kxs).astype(jnp.float32)          # (KW, W+2, W)
    m = (shift[None, :, :, None, :, None]
         * w_hwio[:, :, None, :, None, :]).sum(axis=1)    # (KH, W+2, CIN, W, COUT)
    w_toep = m.reshape(KH * (W + 2) * CIN, W * COUT)      # (216, 128)

    bias_lane = jnp.tile(bias, (W,)).reshape(1, W * COUT)  # (1, 128)

    if matmul_dtype is not None:
        x = x.astype(matmul_dtype)
        w_toep = w_toep.astype(matmul_dtype)

    out = pl.pallas_call(
        conv_bn_kernel,
        out_shape=jax.ShapeDtypeStruct((n, H, W * COUT), x_seq.dtype),
        grid_spec=pltpu.PrefetchScalarGridSpec(
            num_scalar_prefetch=0,
            grid=(num_blocks,),
            in_specs=[
                pl.BlockSpec((sb, H + 2, (W + 2) * CIN),
                             lambda i: (i, 0, 0)),
                pl.BlockSpec((KH * (W + 2) * CIN, W * COUT),
                             lambda i: (0, 0)),
                pl.BlockSpec((1, W * COUT), lambda i: (0, 0)),
            ],
            out_specs=pl.BlockSpec((sb, H, W * COUT), lambda i: (i, 0, 0)),
        ),
        compiler_params=pltpu.CompilerParams(
            dimension_semantics=("parallel",)),
    )(x, w_toep, bias_lane)

    # --- glue: lane-dense slab -> NHWC -> NCHW, un-flatten (T*B) -> (T, B) ---
    out = out.reshape(n, H, W, COUT)
    out = jnp.transpose(out, (0, 3, 1, 2))
    return out.reshape(t, b, COUT, H, W)


def _reference(x_seq, weight, conv_bias, gamma, beta, run_mean, run_var,
               eps=BN_EPS):
    """Pure-JAX reference (lax conv) for sanity checking."""
    t, b, c, h, w = x_seq.shape
    x = x_seq.reshape(t * b, c, h, w)
    y = jax.lax.conv_general_dilated(
        x, weight, window_strides=(1, 1), padding=((1, 1), (1, 1)),
        dimension_numbers=("NCHW", "OIHW", "NCHW"))
    y = y + conv_bias[None, :, None, None]
    inv_std = 1.0 / jnp.sqrt(run_var + eps)
    y = (y - run_mean[None, :, None, None]) * (gamma * inv_std)[None, :, None,
                                                                None]
    y = y + beta[None, :, None, None]
    return y.reshape(t, b, COUT, h, w)


if __name__ == "__main__":
    key = jax.random.PRNGKey(0)
    k_x, k_w = jax.random.split(key)

    x_seq = jax.random.normal(k_x, (T, B, CIN, H, W), dtype=jnp.float32)

    # Deterministic synthetic parameters (shapes from Conv2d(4,8,3) + BN(8)).
    weight = (jax.random.normal(k_w, (COUT, CIN, KH, KW), dtype=jnp.float32)
              * 0.1)
    conv_bias = jnp.linspace(-0.1, 0.1, COUT, dtype=jnp.float32)
    gamma = jnp.linspace(0.8, 1.2, COUT, dtype=jnp.float32)
    beta = jnp.linspace(-0.05, 0.05, COUT, dtype=jnp.float32)
    run_mean = jnp.linspace(-0.2, 0.2, COUT, dtype=jnp.float32)
    run_var = jnp.linspace(0.5, 1.5, COUT, dtype=jnp.float32)

    out = seq_to_ann_conv_bn(x_seq, weight, conv_bias, gamma, beta, run_mean,
                             run_var)
    out = jax.block_until_ready(out)

    ref = _reference(x_seq, weight, conv_bias, gamma, beta, run_mean, run_var)
    assert out.shape == (T, B, COUT, H, W), out.shape
    assert jnp.allclose(out, ref, atol=5e-4, rtol=5e-4), (
        float(jnp.max(jnp.abs(out - ref))))

    print("KERNEL_OK")
</pallas_src>

<mosaic_0001>
module attributes {stable_mosaic.version = 11 : i64} {
  func.func @conv_bn_kernel(%arg0: i32, %arg1: memref<8x18x72xf32, #tpu.memory_space<vmem>>, %arg2: memref<216x128xf32, #tpu.memory_space<vmem>>, %arg3: memref<1x128xf32, #tpu.memory_space<vmem>>, %arg4: memref<8x16x128xf32, #tpu.memory_space<vmem>>) attributes {dimension_semantics = [#tpu.dimension_semantics<parallel>], iteration_bounds = array<i64: 2>, scalar_prefetch = 0 : i64, scratch_operands = 0 : i64, tpu.core_type = #tpu.core_type<tc>, window_params = [{transform_indices = @transform_0, window_bounds = array<i64: 8, 18, 72>}, {pipeline_mode = #tpu.pipeline_mode<synchronous>, transform_indices = @transform_1, window_bounds = array<i64: 216, 128>}, {pipeline_mode = #tpu.pipeline_mode<synchronous>, transform_indices = @transform_2, window_bounds = array<i64: 1, 128>}, {transform_indices = @transform_3, window_bounds = array<i64: 8, 16, 128>}]} {
    %c0 = arith.constant 0 : index
    %c0_0 = arith.constant 0 : index
    %c0_1 = arith.constant 0 : index
    %0 = vector.load %arg1[%c0, %c0_0, %c0_1] : memref<8x18x72xf32, #tpu.memory_space<vmem>>, vector<8x18x72xf32>
    %c0_2 = arith.constant 0 : index
    %c0_3 = arith.constant 0 : index
    %1 = vector.load %arg2[%c0_2, %c0_3] : memref<216x128xf32, #tpu.memory_space<vmem>>, vector<216x128xf32>
    %2 = vector.extract_strided_slice %0 {offsets = [0, 0, 0], sizes = [8, 16, 72], strides = [1, 1, 1]} : vector<8x18x72xf32> to vector<8x16x72xf32>
    %3 = vector.shape_cast %2 : vector<8x16x72xf32> to vector<128x72xf32>
    %4 = vector.extract_strided_slice %1 {offsets = [0, 0], sizes = [72, 128], strides = [1, 1]} : vector<216x128xf32> to vector<72x128xf32>
    %cst = arith.constant dense<0.000000e+00> : vector<128x128xf32>
    %5 = tpu.matmul %3, %4, %cst {dimension_numbers = #tpu.dot_dimension_numbers<[1], [0], [0], [1], [0, 0, 1, 1], [], []>} : vector<128x72xf32>, vector<72x128xf32>, vector<128x128xf32> -> vector<128x128xf32>
    %6 = vector.extract_strided_slice %0 {offsets = [0, 1, 0], sizes = [8, 16, 72], strides = [1, 1, 1]} : vector<8x18x72xf32> to vector<8x16x72xf32>
    %7 = vector.shape_cast %6 : vector<8x16x72xf32> to vector<128x72xf32>
    %8 = vector.extract_strided_slice %1 {offsets = [72, 0], sizes = [72, 128], strides = [1, 1]} : vector<216x128xf32> to vector<72x128xf32>
    %cst_4 = arith.constant dense<0.000000e+00> : vector<128x128xf32>
    %9 = tpu.matmul %7, %8, %cst_4 {dimension_numbers = #tpu.dot_dimension_numbers<[1], [0], [0], [1], [0, 0, 1, 1], [], []>} : vector<128x72xf32>, vector<72x128xf32>, vector<128x128xf32> -> vector<128x128xf32>
    %10 = arith.addf %5, %9 : vector<128x128xf32>
    %11 = vector.extract_strided_slice %0 {offsets = [0, 2, 0], sizes = [8, 16, 72], strides = [1, 1, 1]} : vector<8x18x72xf32> to vector<8x16x72xf32>
    %12 = vector.shape_cast %11 : vector<8x16x72xf32> to vector<128x72xf32>
    %13 = vector.extract_strided_slice %1 {offsets = [144, 0], sizes = [72, 128], strides = [1, 1]} : vector<216x128xf32> to vector<72x128xf32>
    %cst_5 = arith.constant dense<0.000000e+00> : vector<128x128xf32>
    %14 = tpu.matmul %12, %13, %cst_5 {dimension_numbers = #tpu.dot_dimension_numbers<[1], [0], [0], [1], [0, 0, 1, 1], [], []>} : vector<128x72xf32>, vector<72x128xf32>, vector<128x128xf32> -> vector<128x128xf32>
    %15 = arith.addf %10, %14 : vector<128x128xf32>
    %c0_6 = arith.constant 0 : index
    %c0_7 = arith.constant 0 : index
    %16 = vector.load %arg3[%c0_6, %c0_7] : memref<1x128xf32, #tpu.memory_space<vmem>>, vector<1x128xf32>
    %17 = vector.broadcast %16 : vector<1x128xf32> to vector<128x128xf32>
    %18 = arith.addf %15, %17 : vector<128x128xf32>
    %19 = vector.shape_cast %18 : vector<128x128xf32> to vector<8x16x128xf32>
    %c0_8 = arith.constant 0 : index
    %c0_9 = arith.constant 0 : index
    %c0_10 = arith.constant 0 : index
    %20 = vector.load %arg4[%c0_8, %c0_9, %c0_10] : memref<8x16x128xf32, #tpu.memory_space<vmem>>, vector<8x16x128xf32>
    tpu.vector_store %arg4[%c0_8, %c0_9, %c0_10], %19 {strides = array<i32>} : memref<8x16x128xf32, #tpu.memory_space<vmem>>, vector<8x16x128xf32>,
    return
  }
  func.func @transform_0(%arg0: i32) -> (i32, i32, i32) {
    %c0_i32 = arith.constant 0 : i32
    %c0_i32_0 = arith.constant 0 : i32
    %c0_i32_1 = arith.constant 0 : i32
    return %arg0, %c0_i32, %c0_i32_0 : i32, i32, i32
  }
  func.func @transform_1(%arg0: i32) -> (i32, i32) {
    %c0_i32 = arith.constant 0 : i32
    %c0_i32_0 = arith.constant 0 : i32
    %c0_i32_1 = arith.constant 0 : i32
    return %c0_i32, %c0_i32_0 : i32, i32
  }
  func.func @transform_2(%arg0: i32) -> (i32, i32) {
    %c0_i32 = arith.constant 0 : i32
    %c0_i32_0 = arith.constant 0 : i32
    %c0_i32_1 = arith.constant 0 : i32
    return %c0_i32, %c0_i32_0 : i32, i32
  }
  func.func @transform_3(%arg0: i32) -> (i32, i32, i32) {
    %c0_i32 = arith.constant 0 : i32
    %c0_i32_0 = arith.constant 0 : i32
    %c0_i32_1 = arith.constant 0 : i32
    return %arg0, %c0_i32, %c0_i32_0 : i32, i32, i32
  }
}

</mosaic_0001>

<llo_original>
// kernel: tpu_custom_call.1
$region0: #{tpu_custom_call.1}
  #allocation0 [shape = 'u32[]', space=smem, size = 0x4, offset = 0x4, fixed_abs, tag = 'smem constant byte address 0x4 - core index']
  #allocation1 [shape = 'u32[72,128]{1,0:T(1,128)}', space=vmem, size = 0x9000, scoped, tag = 'internal scratch']
  %s0 = inlined_call_operand.vmem [shape: f32[16,18,72], index: 0, kind: input, shape index: {}]
  %s1 = inlined_call_operand.vmem [shape: f32[216,128], index: 1, kind: input, shape index: {}]
  %s2 = inlined_call_operand.vmem [shape: f32[1,128], index: 2, kind: input, shape index: {}]
  %s3 = inlined_call_operand.hbm [shape: f32[16,16,128], index: 3, kind: output, shape index: {}]
  %s4 = sld [smem:[#allocation0]]
  $region45: #{tpu_custom_call.1} parent=0
    _
  %s6 = ssub.s32 1, %s4
  %s7 = scalar_select 0, %s6, %s4
  $region1: #{tpu_custom_call.1} parent=0
    #allocation2 [shape = 'u8[131072]{0}', space=vmem, size = 0x20000, scoped, tag = 'output window, operand 0']
    #allocation3 [shape = 's32[2]{0}', space=sflag, size = 0x8, scoped, tag = 'scoped memory for tpu_custom_call.1']
    %8 = vsyncpa [#allocation3], 0
    %s9 = scalar_lea.sflag [#allocation3], 1
    %10 = vsyncpa %s9, 0
    loop: start=0, step=1, limit=4
    $region2: #{tpu_custom_call.1} parent=1 // loop_pre_header
      _
    $region3: #{tpu_custom_call.1} parent=1 // loop_header
      %s12 = sphi 0, %s16
      %p13 = scmp.ge.s32.totalorder %s12, 4
      %s22 = sphi 0, %s24
      %s25 = sphi 0, %s22
      %s26 = sphi 0, %s25
      %s42 = sphi 0, %s26
      %s46 = sphi 0, %s46
      %s48 = sphi 0, %s46
      %s49 = sphi 0, %s48
      %s63 = sphi 0, %s49
      %s67 = sphi 0, %s67
      %s69 = sphi 0, %s67
      %s70 = sphi 0, %s69
      %s84 = sphi 0, %s70
      %s90 = sphi 0, %s92
      %s93 = sphi 0, %s90
      %s94 = sphi 0, %s93
      %s110 = sphi 0, %s94
    $region4: #{tpu_custom_call.1} parent=1 // loop_header_branch
      %15 = sbr.rel (%p13) target = $region8
    $region5: #{tpu_custom_call.1} parent=1 // loop_body
      %s17 = ssub.s32 %s12, 1
      %s18 = ssub.s32 %s12, 2
      %s19 = sadd.s32 %s12, 1
      %s20 = ssub.s32 %s12, %s19
      %p21 = scmp.eq.s32.totalorder %s20, 0
      %s23 = sadd.s32 %s22, 1
      %s24 = scalar_select %p21, %s22, %s23
      %p27 = pneg %p21
      %p28 = scmp.eq.s32.totalorder %s12, 1
      %p29 = por %p27, %p28
      %p30 = scmp.ne.s32.totalorder %s22, %s25
      %p31 = scmp.eq.s32.totalorder %s12, 0
      %p32 = por %p30, %p31
      %p33 = scmp.ne.s32.totalorder %s22, %s25
      %p34 = scmp.eq.s32.totalorder %s17, 1
      %p35 = por %p33, %p34
      %p36 = scmp.ne.s32.totalorder %s25, %s26
      %p37 = scmp.eq.s32.totalorder %s17, 0
      %p38 = por %p36, %p37
      %p39 = scmp.ne.s32.totalorder %s25, %s26
      %p40 = scmp.eq.s32.totalorder %s18, 1
      %p41 = por %p39, %p40
      %p43 = scmp.ne.s32.totalorder %s26, %s42
      %p44 = scmp.eq.s32.totalorder %s18, 0
      %p45 = por %p43, %p44
      %s47 = sadd.s32 %s46, 1
      %p50 = scmp.eq.s32.totalorder %s12, 1
      %p51 = scmp.ne.s32.totalorder %s46, %s48
      %p52 = scmp.eq.s32.totalorder %s12, 0
      %p53 = por %p51, %p52
      %p54 = scmp.ne.s32.totalorder %s46, %s48
      %p55 = scmp.eq.s32.totalorder %s17, 1
      %p56 = por %p54, %p55
      %p57 = scmp.ne.s32.totalorder %s48, %s49
      %p58 = scmp.eq.s32.totalorder %s17, 0
      %p59 = por %p57, %p58
      %p60 = scmp.ne.s32.totalorder %s48, %s49
      %p61 = scmp.eq.s32.totalorder %s18, 1
      %p62 = por %p60, %p61
      %p64 = scmp.ne.s32.totalorder %s49, %s63
      %p65 = scmp.eq.s32.totalorder %s18, 0
      %p66 = por %p64, %p65
      %s68 = sadd.s32 %s67, 1
      %p71 = scmp.eq.s32.totalorder %s12, 1
      %p72 = scmp.ne.s32.totalorder %s67, %s69
      %p73 = scmp.eq.s32.totalorder %s12, 0
      %p74 = por %p72, %p73
      %p75 = scmp.ne.s32.totalorder %s67, %s69
      %p76 = scmp.eq.s32.totalorder %s17, 1
      %p77 = por %p75, %p76
      %p78 = scmp.ne.s32.totalorder %s69, %s70
      %p79 = scmp.eq.s32.totalorder %s17, 0
      %p80 = por %p78, %p79
      %p81 = scmp.ne.s32.totalorder %s69, %s70
      %p82 = scmp.eq.s32.totalorder %s18, 1
      %p83 = por %p81, %p82
      %p85 = scmp.ne.s32.totalorder %s70, %s84
      %p86 = scmp.eq.s32.totalorder %s18, 0
      %p87 = por %p85, %p86
      %s88 = ssub.s32 %s12, %s19
      %p89 = scmp.eq.s32.totalorder %s88, 0
      %s91 = sadd.s32 %s90, 1
      %s92 = scalar_select %p89, %s90, %s91
      %p95 = pneg %p89
      %p96 = scmp.eq.s32.totalorder %s12, 1
      %p97 = por %p95, %p96
      %p98 = scmp.ne.s32.totalorder %s90, %s93
      %p99 = scmp.eq.s32.totalorder %s12, 0
      %p100 = por %p98, %p99
      %p101 = scmp.ne.s32.totalorder %s90, %s93
      %p102 = scmp.eq.s32.totalorder %s17, 1
      %p103 = por %p101, %p102
      %p104 = scmp.ne.s32.totalorder %s93, %s94
      %p105 = scmp.eq.s32.totalorder %s17, 0
      %p106 = por %p104, %p105
      %p107 = scmp.ne.s32.totalorder %s93, %s94
      %p108 = scmp.eq.s32.totalorder %s18, 1
      %p109 = por %p107, %p108
      %p111 = scmp.ne.s32.totalorder %s94, %s110
      %p112 = scmp.eq.s32.totalorder %s18, 0
      %p113 = por %p111, %p112
      %p114 = scmp.le.s32.totalorder 1, %s12
      %p115 = scmp.lt.s32.totalorder %s12, 3
      %p116 = pnand %p114, %p115
      %p117 = pneg %p116
      // Predicated region
      $region9: #{tpu_custom_call.1} parent=5 // pred_check
        _
      $region10: #{tpu_custom_call.1} parent=5 // pred_check_branch
        %119 = sbr.rel (%p116) target = $region12
      $region11: #{tpu_custom_call.1} parent=5 // pred_region
        %s120 = ssub.s32 %s12, 1
        // Predicated region
        $region13: #{tpu_custom_call.1} parent=11 // pred_check
          %p121 = pneg %p59
        $region14: #{tpu_custom_call.1} parent=11 // pred_check_branch
          %123 = sbr.rel (%p121) target = $region16
        $region15: #{tpu_custom_call.1} parent=11 // pred_region
          _
        $region16: #{tpu_custom_call.1} parent=11 // pred_fallthru
          _
        // Predicated region
        $region17: #{tpu_custom_call.1} parent=11 // pred_check
          %p124 = pneg %p80
        $region18: #{tpu_custom_call.1} parent=11 // pred_check_branch
          %126 = sbr.rel (%p124) target = $region20
        $region19: #{tpu_custom_call.1} parent=11 // pred_region
          _
        $region20: #{tpu_custom_call.1} parent=11 // pred_fallthru
          _
      $region12: #{tpu_custom_call.1} parent=5 // pred_fallthru
        _
      %p127 = scmp.lt.s32.totalorder %s12, 2
      // Predicated region
      $region21: #{tpu_custom_call.1} parent=5 // pred_check
        %p128 = pneg %p127
      $region22: #{tpu_custom_call.1} parent=5 // pred_check_branch
        %130 = sbr.rel (%p128) target = $region24
      $region23: #{tpu_custom_call.1} parent=5 // pred_region
        // Predicated region
        $region25: #{tpu_custom_call.1} parent=23 // pred_check
          %p131 = pneg %p32
        $region26: #{tpu_custom_call.1} parent=23 // pred_check_branch
          %133 = sbr.rel (%p131) target = $region28
        $region27: #{tpu_custom_call.1} parent=23 // pred_region
          %s134 = smul.u32 8, %s12
          %p135 = scmp.lt.s32.totalorder %s134, 15
          %s136 = scalar_select %p135, %s134, 15
          %s137 = smul.addr %s136, 3
          %s138 = smul.addr %s137, 8
          %s139 = scalar_lea.vmem %s0, %s138
          %s140 = smul.u32 8, %s12
        $region28: #{tpu_custom_call.1} parent=23 // pred_fallthru
          _
      $region24: #{tpu_custom_call.1} parent=5 // pred_fallthru
        _
      %p141 = scmp.le.s32.totalorder 1, %s12
      %p142 = scmp.lt.s32.totalorder %s12, 3
      %p143 = pnand %p141, %p142
      %p144 = pneg %p143
      // Predicated region
      $region29: #{tpu_custom_call.1} parent=5 // pred_check
        _
      $region30: #{tpu_custom_call.1} parent=5 // pred_check_branch
        %146 = sbr.rel (%p143) target = $region32
      $region31: #{tpu_custom_call.1} parent=5 // pred_region
        %s147 = ssub.s32 %s12, 1
        %s148 = smul.u32 8, %s17
        %p149 = scmp.lt.s32.totalorder %s148, 15
        %s150 = scalar_select %p149, %s148, 15
        %s151 = smul.addr %s150, 3
        %s152 = smul.addr %s151, 8
        %s153 = scalar_lea.vmem %s0, %s152
        %p154 = pneg %p38
        %p155 = pneg %p35
        %p156 = pneg %p59
        %p157 = pneg %p56
        %p158 = pneg %p80
        %p159 = pneg %p77
        %p160 = pneg %p106
        %p161 = pneg %p103
        %s162 = sand.u32 %s93, 1
        %s163 = scalar_lea.sflag [#allocation3], %s162
        %s164 = sand.u32 %s93, 1
        %s165 = smul.addr %s164, 128
        %s166 = scalar_lea.vmem [#allocation2], %s165
        %s167 = smul.u32 8, %s17
        %p168 = scmp.lt.s32.totalorder %s167, 15
        %s169 = scalar_select %p168, %s167, 15
        %s170 = smul.addr %s169, 3
        %s171 = smul.addr %s170, 8
        %s172 = scalar_lea.vmem %s0, %s171
        %s173 = smul.u32 8, %s17
        %s174 = smul.u32 8, %s17
        %v175 = vld [vmem:[%s172] sm:$0xff]
        %v176 = vld [vmem:[%s172 + $0x8] sm:$0xff]
        %v177 = vld [vmem:[%s172 + $0x10] sm:$0x3]
        %v178 = vld [vmem:[%s172 + $0x18] sm:$0xff]
        %v179 = vld [vmem:[%s172 + $0x20] sm:$0xff]
        %v180 = vld [vmem:[%s172 + $0x28] sm:$0x3]
        %v181 = vld [vmem:[%s172 + $0x30] sm:$0xff]
        %v182 = vld [vmem:[%s172 + $0x38] sm:$0xff]
        %v183 = vld [vmem:[%s172 + $0x40] sm:$0x3]
        %v184 = vld [vmem:[%s172 + $0x48] sm:$0xff]
        %v185 = vld [vmem:[%s172 + $0x50] sm:$0xff]
        %v186 = vld [vmem:[%s172 + $0x58] sm:$0x3]
        %v187 = vld [vmem:[%s172 + $0x60] sm:$0xff]
        %v188 = vld [vmem:[%s172 + $0x68] sm:$0xff]
        %v189 = vld [vmem:[%s172 + $0x70] sm:$0x3]
        %v190 = vld [vmem:[%s172 + $0x78] sm:$0xff]
        %v191 = vld [vmem:[%s172 + $0x80] sm:$0xff]
        %v192 = vld [vmem:[%s172 + $0x88] sm:$0x3]
        %v193 = vld [vmem:[%s172 + $0x90] sm:$0xff]
        %v194 = vld [vmem:[%s172 + $0x98] sm:$0xff]
        %v195 = vld [vmem:[%s172 + $0xa0] sm:$0x3]
        %v196 = vld [vmem:[%s172 + $0xa8] sm:$0xff]
        %v197 = vld [vmem:[%s172 + $0xb0] sm:$0xff]
        %v198 = vld [vmem:[%s172 + $0xb8] sm:$0x3]
        %v199 = vld [vmem:[%s1] sm:$0xff]
        %v200 = vld [vmem:[%s1 + $0x8] sm:$0xff]
        %v201 = vld [vmem:[%s1 + $0x10] sm:$0xff]
        %v202 = vld [vmem:[%s1 + $0x18] sm:$0xff]
        %v203 = vld [vmem:[%s1 + $0x20] sm:$0xff]
        %v204 = vld [vmem:[%s1 + $0x28] sm:$0xff]
        %v205 = vld [vmem:[%s1 + $0x30] sm:$0xff]
        %v206 = vld [vmem:[%s1 + $0x38] sm:$0xff]
        %v207 = vld [vmem:[%s1 + $0x40] sm:$0xff]
        %v208 = vld [vmem:[%s1 + $0x48] sm:$0xff]
        %v209 = vld [vmem:[%s1 + $0x50] sm:$0xff]
        %v210 = vld [vmem:[%s1 + $0x58] sm:$0xff]
        %v211 = vld [vmem:[%s1 + $0x60] sm:$0xff]
        %v212 = vld [vmem:[%s1 + $0x68] sm:$0xff]
        %v213 = vld [vmem:[%s1 + $0x70] sm:$0xff]
        %v214 = vld [vmem:[%s1 + $0x78] sm:$0xff]
        %v215 = vld [vmem:[%s1 + $0x80] sm:$0xff]
        %v216 = vld [vmem:[%s1 + $0x88] sm:$0xff]
        %v217 = vld [vmem:[%s1 + $0x90] sm:$0xff]
        %v218 = vld [vmem:[%s1 + $0x98] sm:$0xff]
        %v219 = vld [vmem:[%s1 + $0xa0] sm:$0xff]
        %v220 = vld [vmem:[%s1 + $0xa8] sm:$0xff]
        %v221 = vld [vmem:[%s1 + $0xb0] sm:$0xff]
        %v222 = vld [vmem:[%s1 + $0xb8] sm:$0xff]
        %v223 = vld [vmem:[%s1 + $0xc0] sm:$0xff]
        %v224 = vld [vmem:[%s1 + $0xc8] sm:$0xff]
        %v225 = vld [vmem:[%s1 + $0xd0] sm:$0xff]
        %vm250 = vcmask 1046528
        %v251 = vrot.slane %v175, 1
        %v252 = vrot.slane %v176, 1
        %v253 = vsel %vm250, %v251, %v252
        %v254 = vrot.slane %v177, 1
        %v255 = vsel %vm250, %v252, %v254
        %v256 = vrot.slane %v178, 1
        %v257 = vrot.slane %v179, 1
        %v258 = vsel %vm250, %v256, %v257
        %v259 = vrot.slane %v180, 1
        %v260 = vsel %vm250, %v257, %v259
        %v261 = vrot.slane %v181, 1
        %v262 = vrot.slane %v182, 1
        %v263 = vsel %vm250, %v261, %v262
        %v264 = vrot.slane %v183, 1
        %v265 = vsel %vm250, %v262, %v264
        %v266 = vrot.slane %v184, 1
        %v267 = vrot.slane %v185, 1
        %v268 = vsel %vm250, %v266, %v267
        %v269 = vrot.slane %v186, 1
        %v270 = vsel %vm250, %v267, %v269
        %v271 = vrot.slane %v187, 1
        %v272 = vrot.slane %v188, 1
        %v273 = vsel %vm250, %v271, %v272
        %v274 = vrot.slane %v189, 1
        %v275 = vsel %vm250, %v272, %v274
        %v276 = vrot.slane %v190, 1
        %v277 = vrot.slane %v191, 1
        %v278 = vsel %vm250, %v276, %v277
        %v279 = vrot.slane %v192, 1
        %v280 = vsel %vm250, %v277, %v279
        %v281 = vrot.slane %v193, 1
        %v282 = vrot.slane %v194, 1
        %v283 = vsel %vm250, %v281, %v282
        %v284 = vrot.slane %v195, 1
        %v285 = vsel %vm250, %v282, %v284
        %v286 = vrot.slane %v196, 1
        %v287 = vrot.slane %v197, 1
        %v288 = vsel %vm250, %v286, %v287
        %v289 = vrot.slane %v198, 1
        %v290 = vsel %vm250, %v287, %v289
        %vm291 = vcmask 588800
        %v292 = vsel %vm291, %v253, 0
        %v294 = vsel %vm291, %v255, 0
        %v296 = vsel %vm291, %v258, 0
        %v298 = vsel %vm291, %v260, 0
        %v300 = vsel %vm291, %v263, 0
        %v302 = vsel %vm291, %v265, 0
        %v304 = vsel %vm291, %v268, 0
        %v306 = vsel %vm291, %v270, 0
        %v308 = vsel %vm291, %v273, 0
        %v310 = vsel %vm291, %v275, 0
        %v312 = vsel %vm291, %v278, 0
        %v314 = vsel %vm291, %v280, 0
        %v316 = vsel %vm291, %v283, 0
        %v318 = vsel %vm291, %v285, 0
        %v320 = vsel %vm291, %v288, 0
        %v322 = vsel %vm291, %v290, 0
        %324 = vmatpush.msra.mxu0 0.0
        %325 = vmatpush.msra.mxu0 0.0
        %326 = vmatpush.msra.mxu0 0.0
        %327 = vmatpush.msra.mxu0 0.0
        %328 = vmatpush.msra.mxu0 0.0
        %329 = vmatpush.msra.mxu0 0.0
        %330 = vmatpush.msra.mxu0 0.0
        %331 = vmatpush.msra.mxu0 %v216
        %332 = vmatpush.msra.mxu0 %v215
        %333 = vmatpush.msra.mxu0 %v214
        %334 = vmatpush.msra.mxu0 %v213
        %335 = vmatpush.msra.mxu0 %v212
        %336 = vmatpush.msra.mxu0 %v211
        %337 = vmatpush.msra.mxu0 %v210
        %338 = vmatpush.msra.mxu0 %v209
        %339 = vmatpush.msra.mxu0 %v208
        %340 = vmatmul.f32.gmra.mxu0 %v292
        %v341 = vpop.f32.mrf.mxu0
        %v342 = vadd.f32 0.0, %v341
        %343 = vmatmul.f32.gmra.mxu0 %v294
        %v344 = vpop.f32.mrf.mxu0
        %v345 = vadd.f32 0.0, %v344
        %346 = vmatmul.f32.gmra.mxu0 %v296
        %v347 = vpop.f32.mrf.mxu0
        %v348 = vadd.f32 0.0, %v347
        %349 = vmatmul.f32.gmra.mxu0 %v298
        %v350 = vpop.f32.mrf.mxu0
        %v351 = vadd.f32 0.0, %v350
        %352 = vmatmul.f32.gmra.mxu0 %v300
        %v353 = vpop.f32.mrf.mxu0
        %v354 = vadd.f32 0.0, %v353
        %355 = vmatmul.f32.gmra.mxu0 %v302
        %v356 = vpop.f32.mrf.mxu0
        %v357 = vadd.f32 0.0, %v356
        %358 = vmatmul.f32.gmra.mxu0 %v304
        %v359 = vpop.f32.mrf.mxu0
        %v360 = vadd.f32 0.0, %v359
        %361 = vmatmul.f32.gmra.mxu0 %v306
        %v362 = vpop.f32.mrf.mxu0
        %v363 = vadd.f32 0.0, %v362
        %364 = vmatmul.f32.gmra.mxu0 %v308
        %v365 = vpop.f32.mrf.mxu0
        %v366 = vadd.f32 0.0, %v365
        %367 = vmatmul.f32.gmra.mxu0 %v310
        %v368 = vpop.f32.mrf.mxu0
        %v369 = vadd.f32 0.0, %v368
        %370 = vmatmul.f32.gmra.mxu0 %v312
        %v371 = vpop.f32.mrf.mxu0
        %v372 = vadd.f32 0.0, %v371
        %373 = vmatmul.f32.gmra.mxu0 %v314
        %v374 = vpop.f32.mrf.mxu0
        %v375 = vadd.f32 0.0, %v374
        %376 = vmatmul.f32.gmra.mxu0 %v316
        %v377 = vpop.f32.mrf.mxu0
        %v378 = vadd.f32 0.0, %v377
        %379 = vmatmul.f32.gmra.mxu0 %v318
        %v380 = vpop.f32.mrf.mxu0
        %v381 = vadd.f32 0.0, %v380
        %382 = vmatmul.f32.gmra.mxu0 %v320
        %v383 = vpop.f32.mrf.mxu0
        %v384 = vadd.f32 0.0, %v383
        %385 = vmatmul.f32.gmra.mxu0 %v322
        %v386 = vpop.f32.mrf.mxu0
        %v387 = vadd.f32 0.0, %v386
        %388 = vdwg.mxu0
        %v389 = vsel %vm291, %v175, 0
        %v391 = vsel %vm291, %v176, 0
        %v393 = vsel %vm291, %v178, 0
        %v395 = vsel %vm291, %v179, 0
        %v397 = vsel %vm291, %v181, 0
        %v399 = vsel %vm291, %v182, 0
        %v401 = vsel %vm291, %v184, 0
        %v403 = vsel %vm291, %v185, 0
        %v405 = vsel %vm291, %v187, 0
        %v407 = vsel %vm291, %v188, 0
        %v409 = vsel %vm291, %v190, 0
        %v411 = vsel %vm291, %v191, 0
        %v413 = vsel %vm291, %v193, 0
        %v415 = vsel %vm291, %v194, 0
        %v417 = vsel %vm291, %v196, 0
        %v419 = vsel %vm291, %v197, 0
        %421 = vmatpush.msra.mxu0 0.0
        %422 = vmatpush.msra.mxu0 0.0
        %423 = vmatpush.msra.mxu0 0.0
        %424 = vmatpush.msra.mxu0 0.0
        %425 = vmatpush.msra.mxu0 0.0
        %426 = vmatpush.msra.mxu0 0.0
        %427 = vmatpush.msra.mxu0 0.0
        %428 = vmatpush.msra.mxu0 %v207
        %429 = vmatpush.msra.mxu0 %v206
        %430 = vmatpush.msra.mxu0 %v205
        %431 = vmatpush.msra.mxu0 %v204
        %432 = vmatpush.msra.mxu0 %v203
        %433 = vmatpush.msra.mxu0 %v202
        %434 = vmatpush.msra.mxu0 %v201
        %435 = vmatpush.msra.mxu0 %v200
        %436 = vmatpush.msra.mxu0 %v199
        %437 = vmatmul.f32.gmra.mxu0 %v389
        %v438 = vpop.f32.mrf.mxu0
        %v439 = vadd.f32 %v342, %v438
        %440 = vmatmul.f32.gmra.mxu0 %v391
        %v441 = vpop.f32.mrf.mxu0
        %v442 = vadd.f32 %v345, %v441
        %443 = vmatmul.f32.gmra.mxu0 %v393
        %v444 = vpop.f32.mrf.mxu0
        %v445 = vadd.f32 %v348, %v444
        %446 = vmatmul.f32.gmra.mxu0 %v395
        %v447 = vpop.f32.mrf.mxu0
        %v448 = vadd.f32 %v351, %v447
        %449 = vmatmul.f32.gmra.mxu0 %v397
        %v450 = vpop.f32.mrf.mxu0
        %v451 = vadd.f32 %v354, %v450
        %452 = vmatmul.f32.gmra.mxu0 %v399
        %v453 = vpop.f32.mrf.mxu0
        %v454 = vadd.f32 %v357, %v453
        %455 = vmatmul.f32.gmra.mxu0 %v401
        %v456 = vpop.f32.mrf.mxu0
        %v457 = vadd.f32 %v360, %v456
        %458 = vmatmul.f32.gmra.mxu0 %v403
        %v459 = vpop.f32.mrf.mxu0
        %v460 = vadd.f32 %v363, %v459
        %461 = vmatmul.f32.gmra.mxu0 %v405
        %v462 = vpop.f32.mrf.mxu0
        %v463 = vadd.f32 %v366, %v462
        %464 = vmatmul.f32.gmra.mxu0 %v407
        %v465 = vpop.f32.mrf.mxu0
        %v466 = vadd.f32 %v369, %v465
        %467 = vmatmul.f32.gmra.mxu0 %v409
        %v468 = vpop.f32.mrf.mxu0
        %v469 = vadd.f32 %v372, %v468
        %470 = vmatmul.f32.gmra.mxu0 %v411
        %v471 = vpop.f32.mrf.mxu0
        %v472 = vadd.f32 %v375, %v471
        %473 = vmatmul.f32.gmra.mxu0 %v413
        %v474 = vpop.f32.mrf.mxu0
        %v475 = vadd.f32 %v378, %v474
        %476 = vmatmul.f32.gmra.mxu0 %v415
        %v477 = vpop.f32.mrf.mxu0
        %v478 = vadd.f32 %v381, %v477
        %479 = vmatmul.f32.gmra.mxu0 %v417
        %v480 = vpop.f32.mrf.mxu0
        %v481 = vadd.f32 %v384, %v480
        %482 = vmatmul.f32.gmra.mxu0 %v419
        %v483 = vpop.f32.mrf.mxu0
        %v484 = vadd.f32 %v387, %v483
        %485 = vdwg.mxu0
        %vm486 = vcmask 1045504
        %v487 = vrot.slane %v175, 2
        %v488 = vrot.slane %v176, 2
        %v489 = vsel %vm486, %v487, %v488
        %v490 = vrot.slane %v177, 2
        %v491 = vsel %vm486, %v488, %v490
        %v492 = vrot.slane %v178, 2
        %v493 = vrot.slane %v179, 2
        %v494 = vsel %vm486, %v492, %v493
        %v495 = vrot.slane %v180, 2
        %v496 = vsel %vm486, %v493, %v495
        %v497 = vrot.slane %v181, 2
        %v498 = vrot.slane %v182, 2
        %v499 = vsel %vm486, %v497, %v498
        %v500 = vrot.slane %v183, 2
        %v501 = vsel %vm486, %v498, %v500
        %v502 = vrot.slane %v184, 2
        %v503 = vrot.slane %v185, 2
        %v504 = vsel %vm486, %v502, %v503
        %v505 = vrot.slane %v186, 2
        %v506 = vsel %vm486, %v503, %v505
        %v507 = vrot.slane %v187, 2
        %v508 = vrot.slane %v188, 2
        %v509 = vsel %vm486, %v507, %v508
        %v510 = vrot.slane %v189, 2
        %v511 = vsel %vm486, %v508, %v510
        %v512 = vrot.slane %v190, 2
        %v513 = vrot.slane %v191, 2
        %v514 = vsel %vm486, %v512, %v513
        %v515 = vrot.slane %v192, 2
        %v516 = vsel %vm486, %v513, %v515
        %v517 = vrot.slane %v193, 2
        %v518 = vrot.slane %v194, 2
        %v519 = vsel %vm486, %v517, %v518
        %v520 = vrot.slane %v195, 2
        %v521 = vsel %vm486, %v518, %v520
        %v522 = vrot.slane %v196, 2
        %v523 = vrot.slane %v197, 2
        %v524 = vsel %vm486, %v522, %v523
        %v525 = vrot.slane %v198, 2
        %v526 = vsel %vm486, %v523, %v525
        %v527 = vsel %vm291, %v489, 0
        %v529 = vsel %vm291, %v491, 0
        %v531 = vsel %vm291, %v494, 0
        %v533 = vsel %vm291, %v496, 0
        %v535 = vsel %vm291, %v499, 0
        %v537 = vsel %vm291, %v501, 0
        %v539 = vsel %vm291, %v504, 0
        %v541 = vsel %vm291, %v506, 0
        %v543 = vsel %vm291, %v509, 0
        %v545 = vsel %vm291, %v511, 0
        %v547 = vsel %vm291, %v514, 0
        %v549 = vsel %vm291, %v516, 0
        %v551 = vsel %vm291, %v519, 0
        %v553 = vsel %vm291, %v521, 0
        %v555 = vsel %vm291, %v524, 0
        %v557 = vsel %vm291, %v526, 0
        %559 = vmatpush.msra.mxu0 0.0
        %560 = vmatpush.msra.mxu0 0.0
        %561 = vmatpush.msra.mxu0 0.0
        %562 = vmatpush.msra.mxu0 0.0
        %563 = vmatpush.msra.mxu0 0.0
        %564 = vmatpush.msra.mxu0 0.0
        %565 = vmatpush.msra.mxu0 0.0
        %566 = vmatpush.msra.mxu0 %v225
        %567 = vmatpush.msra.mxu0 %v224
        %568 = vmatpush.msra.mxu0 %v223
        %569 = vmatpush.msra.mxu0 %v222
        %570 = vmatpush.msra.mxu0 %v221
        %571 = vmatpush.msra.mxu0 %v220
        %572 = vmatpush.msra.mxu0 %v219
        %573 = vmatpush.msra.mxu0 %v218
        %574 = vmatpush.msra.mxu0 %v217
        %575 = vmatmul.f32.gmra.mxu0 %v527
        %v576 = vpop.f32.mrf.mxu0
        %v577 = vadd.f32 0.0, %v576
        %578 = vmatmul.f32.gmra.mxu0 %v529
        %v579 = vpop.f32.mrf.mxu0
        %v580 = vadd.f32 0.0, %v579
        %581 = vmatmul.f32.gmra.mxu0 %v531
        %v582 = vpop.f32.mrf.mxu0
        %v583 = vadd.f32 0.0, %v582
        %584 = vmatmul.f32.gmra.mxu0 %v533
        %v585 = vpop.f32.mrf.mxu0
        %v586 = vadd.f32 0.0, %v585
        %587 = vmatmul.f32.gmra.mxu0 %v535
        %v588 = vpop.f32.mrf.mxu0
        %v589 = vadd.f32 0.0, %v588
        %590 = vmatmul.f32.gmra.mxu0 %v537
        %v591 = vpop.f32.mrf.mxu0
        %v592 = vadd.f32 0.0, %v591
        %593 = vmatmul.f32.gmra.mxu0 %v539
        %v594 = vpop.f32.mrf.mxu0
        %v595 = vadd.f32 0.0, %v594
        %596 = vmatmul.f32.gmra.mxu0 %v541
        %v597 = vpop.f32.mrf.mxu0
        %v598 = vadd.f32 0.0, %v597
        %599 = vmatmul.f32.gmra.mxu0 %v543
        %v600 = vpop.f32.mrf.mxu0
        %v601 = vadd.f32 0.0, %v600
        %602 = vmatmul.f32.gmra.mxu0 %v545
        %v603 = vpop.f32.mrf.mxu0
        %v604 = vadd.f32 0.0, %v603
        %605 = vmatmul.f32.gmra.mxu0 %v547
        %v606 = vpop.f32.mrf.mxu0
        %v607 = vadd.f32 0.0, %v606
        %608 = vmatmul.f32.gmra.mxu0 %v549
        %v609 = vpop.f32.mrf.mxu0
        %v610 = vadd.f32 0.0, %v609
        %611 = vmatmul.f32.gmra.mxu0 %v551
        %v612 = vpop.f32.mrf.mxu0
        %v613 = vadd.f32 0.0, %v612
        %614 = vmatmul.f32.gmra.mxu0 %v553
        %v615 = vpop.f32.mrf.mxu0
        %v616 = vadd.f32 0.0, %v615
        %617 = vmatmul.f32.gmra.mxu0 %v555
        %v618 = vpop.f32.mrf.mxu0
        %v619 = vadd.f32 0.0, %v618
        %620 = vmatmul.f32.gmra.mxu0 %v557
        %v621 = vpop.f32.mrf.mxu0
        %v622 = vadd.f32 0.0, %v621
        %623 = vdwg.mxu0
        %v624 = vadd.f32 %v439, %v577
        %v625 = vadd.f32 %v442, %v580
        %v626 = vadd.f32 %v445, %v583
        %v627 = vadd.f32 %v448, %v586
        %v628 = vadd.f32 %v451, %v589
        %v629 = vadd.f32 %v454, %v592
        %v630 = vadd.f32 %v457, %v595
        %v631 = vadd.f32 %v460, %v598
        %v632 = vadd.f32 %v463, %v601
        %v633 = vadd.f32 %v466, %v604
        %v634 = vadd.f32 %v469, %v607
        %v635 = vadd.f32 %v472, %v610
        %v636 = vadd.f32 %v475, %v613
        %v637 = vadd.f32 %v478, %v616
        %v638 = vadd.f32 %v481, %v619
        %v639 = vadd.f32 %v484, %v622
        %v640 = vld [vmem:[%s2] sm:$0x1]
        %v642 = vperm.slane %v640, 0
        %v644 = vadd.f32 %v624, %v642
        %v645 = vadd.f32 %v625, %v642
        %v646 = vadd.f32 %v626, %v642
        %v647 = vadd.f32 %v627, %v642
        %v648 = vadd.f32 %v628, %v642
        %v649 = vadd.f32 %v629, %v642
        %v650 = vadd.f32 %v630, %v642
        %v651 = vadd.f32 %v631, %v642
        %v652 = vadd.f32 %v632, %v642
        %v653 = vadd.f32 %v633, %v642
        %v654 = vadd.f32 %v634, %v642
        %v655 = vadd.f32 %v635, %v642
        %v656 = vadd.f32 %v636, %v642
        %v657 = vadd.f32 %v637, %v642
        %v658 = vadd.f32 %v638, %v642
        %v659 = vadd.f32 %v639, %v642
        %660 = vst [vmem:[%s166] sm:$0xff] %v644
        %661 = vst [vmem:[%s166 + $0x8] sm:$0xff] %v645
        %662 = vst [vmem:[%s166 + $0x10] sm:$0xff] %v646
        %663 = vst [vmem:[%s166 + $0x18] sm:$0xff] %v647
        %664 = vst [vmem:[%s166 + $0x20] sm:$0xff] %v648
        %665 = vst [vmem:[%s166 + $0x28] sm:$0xff] %v649
        %666 = vst [vmem:[%s166 + $0x30] sm:$0xff] %v650
        %667 = vst [vmem:[%s166 + $0x38] sm:$0xff] %v651
        %668 = vst [vmem:[%s166 + $0x40] sm:$0xff] %v652
        %669 = vst [vmem:[%s166 + $0x48] sm:$0xff] %v653
        %670 = vst [vmem:[%s166 + $0x50] sm:$0xff] %v654
        %671 = vst [vmem:[%s166 + $0x58] sm:$0xff] %v655
        %672 = vst [vmem:[%s166 + $0x60] sm:$0xff] %v656
        %673 = vst [vmem:[%s166 + $0x68] sm:$0xff] %v657
        %674 = vst [vmem:[%s166 + $0x70] sm:$0xff] %v658
        %675 = vst [vmem:[%s166 + $0x78] sm:$0xff] %v659
        %s676 = sand.u32 %s93, 1
        %s677 = scalar_lea.sflag [#allocation3], %s676
        %s678 = sand.u32 %s93, 1
        %s679 = smul.addr %s678, 128
        %s680 = scalar_lea.vmem [#allocation2], %s679
        // Predicated region
        $region33: #{tpu_custom_call.1} parent=31 // pred_check
          %p681 = pneg %p103
        $region34: #{tpu_custom_call.1} parent=31 // pred_check_branch
          %683 = sbr.rel (%p681) target = $region36
        $region35: #{tpu_custom_call.1} parent=31 // pred_region
          %s684 = smul.u32 8, %s17
          %686 = vsyncadd %s677, 0
          %s687 = smul.addr %s684, 2
          %s688 = smul.addr %s687, 8
          %s689 = scalar_lea.hbm %s3, %s688
          %s690 = sshll.u32 %s680, 4
          %s691 = int_to_ptr.vmem [resolvable:$true] %s690
          %s692 = sshll.u32 %s689, 4
          %s693 = int_to_ptr.hbm [resolvable:$true] %s692
          %698 = dma.vmem_to_hbm [thread:$0]  %s691, 2048, %s693, %s677, 128, 128, 8
        $region36: #{tpu_custom_call.1} parent=31 // pred_fallthru
          _
      $region32: #{tpu_custom_call.1} parent=5 // pred_fallthru
        _
      %p699 = scmp.le.s32.totalorder 2, %s12
      // Predicated region
      $region37: #{tpu_custom_call.1} parent=5 // pred_check
        %p700 = pneg %p699
      $region38: #{tpu_custom_call.1} parent=5 // pred_check_branch
        %702 = sbr.rel (%p700) target = $region40
      $region39: #{tpu_custom_call.1} parent=5 // pred_region
        %s703 = ssub.s32 %s12, 2
        // Predicated region
        $region41: #{tpu_custom_call.1} parent=39 // pred_check
          %p704 = pneg %p109
        $region42: #{tpu_custom_call.1} parent=39 // pred_check_branch
          %706 = sbr.rel (%p704) target = $region44
        $region43: #{tpu_custom_call.1} parent=39 // pred_region
          %s707 = sand.u32 %s94, 1
          %s708 = scalar_lea.sflag [#allocation3], %s707
          %s709 = sand.u32 %s94, 1
          %s710 = smul.addr %s709, 128
          %s711 = scalar_lea.vmem [#allocation2], %s710
          %713 = dma.done %s708, 2048
        $region44: #{tpu_custom_call.1} parent=39 // pred_fallthru
          _
      $region40: #{tpu_custom_call.1} parent=5 // pred_fallthru
        _
    $region6: #{tpu_custom_call.1} parent=1 // loop_footer
      %s16 = sadd.s32 1, %s12
    $region7: #{tpu_custom_call.1} parent=1 // loop_footer_branch
      %11 = sbr.rel target = $region3
    $region8: #{tpu_custom_call.1} parent=1 // loop_exit
      _
    %714 = vsyncpa [#allocation3], 1
    %s715 = scalar_lea.sflag [#allocation3], 1
    %716 = vsyncpa %s715, 1

</llo_original>
